<compile_context>
chip_gen: v7x
topology: tpu7x:2x2x1
jax: 0.10.0
libtpu: 0.0.40
codegen_flags: <defaults>
</compile_context>

<pallas_src>
import functools
import math

import jax
import jax.numpy as jnp
from jax.experimental import pallas as pl
from jax.experimental.pallas import tpu as pltpu


# ---------------------------- wrapper-side precompute helpers ----------------------------

def _round_up(n, m):
    return ((n + m - 1) // m) * m


def _interp_matrix(n_in, n_out):
    """Interpolation matrix A (n_out, n_in) for bilinear resize, align_corners=True."""
    if n_in == 1:
        return jnp.ones((n_out, 1), jnp.float32)
    src = jnp.arange(n_out, dtype=jnp.float32) * (n_in - 1) / (n_out - 1)
    i0 = jnp.clip(jnp.floor(src), 0, n_in - 2).astype(jnp.int32)
    frac = src - i0.astype(jnp.float32)
    rows = jnp.arange(n_out)
    a = jnp.zeros((n_out, n_in), jnp.float32)
    a = a.at[rows, i0].set(1.0 - frac)
    a = a.at[rows, i0 + 1].add(frac)
    return a


# ---------------------------- Pallas kernel ----------------------------

def _deconv_kernel(x_ref, a_ref, wk_ref, b_ref, o_ref, *, k_taps, rows_per_tap):
    # x:  (nb*H, W*Cin)              nb input images stacked along rows, channels minor
    # a:  (K*nb*Ho_pad, nb*H)        height-interp, kh-shifts + block-diag(nb) folded in
    # wk: (K, W*Cin, Nout_pad)       width-interp folded into banded conv weights
    # b:  (1, Nout_pad)              bias tiled per output column (lane-dense)
    # o:  (nb*Ho_pad, Nout_pad)      lane-dense, sublane-padded output slab
    yh = jnp.dot(a_ref[...], x_ref[...], preferred_element_type=jnp.float32)

    # Conv = K accumulating dots on contiguous, 32-aligned row windows of yh.
    acc = jnp.dot(yh[:rows_per_tap, :], wk_ref[0],
                  preferred_element_type=jnp.float32)
    for kh in range(1, k_taps):
        acc = acc + jnp.dot(yh[kh * rows_per_tap:(kh + 1) * rows_per_tap, :],
                            wk_ref[kh], preferred_element_type=jnp.float32)

    # Bias hoisted out of the accumulate path; unmasked lane-dense store.
    o_ref[...] = (acc + b_ref[...]).astype(o_ref.dtype)


# ---------------------------- pallas_call wrapper (forward) ----------------------------

def deconv_forward(x, w, bias, *, kernel_size=3, padding=0, images_per_step=1):
    """deconv.forward: bilinear 2x upsample (align_corners=True) + Conv2d(k, stride=1, padding)."""
    if x.ndim == 3:                       # mirrors `x = x.unsqueeze(0)`
        x = x[None]
    B, Cin, H, W = x.shape
    Cout = w.shape[0]
    K = kernel_size
    H2, W2 = 2 * H, 2 * W
    Hp, Wp = H2 + 2 * padding, W2 + 2 * padding
    Ho, Wo = Hp - K + 1, Wp - K + 1
    assert Ho > 0 and Wo > 0

    nb = images_per_step                  # >1 amortizes per-step overhead on 1-TC chips
    assert B % nb == 0
    G = B // nb

    f32 = jnp.float32

    # Padded output tile dims: unmasked stores + 8-aligned row windows.
    Ho_pad = _round_up(Ho, 8)
    Nout = Wo * Cout
    Nout_pad = _round_up(Nout, 128)
    rows_per_tap = nb * Ho_pad

    # --- Height interpolation: conv padding rows, kh shifts, and block-diag(nb) folded in.
    a_h = _interp_matrix(H, H2)                                   # (2H, H)
    if padding:
        a_h = jnp.pad(a_h, ((padding, padding), (0, 0)))          # (Hp, H)
    a_h_ext = jnp.pad(a_h, ((0, Ho_pad - Ho), (0, 0)))            # (Ho_pad + K - 1, H)
    eye_nb = jnp.eye(nb, dtype=f32)
    a_stack = jnp.concatenate(
        [jnp.kron(eye_nb, a_h_ext[kh:kh + Ho_pad, :]) for kh in range(K)],
        axis=0)                                                   # (K*nb*Ho_pad, nb*H)

    # --- Width interpolation folded into the banded conv weights (per kh tap):
    #     wk2[kh, w*Cin + c, j*Cout + o] = sum_kw a_w[j + kw, w] * w[o, c, kh, kw]
    a_w = _interp_matrix(W, W2)                                   # (2W, W)
    if padding:
        a_w = jnp.pad(a_w, ((padding, padding), (0, 0)))          # (Wp, W)
    aw_win = jnp.stack([a_w[kw:kw + Wo, :] for kw in range(K)], axis=0)   # (K, Wo, W)
    wk2 = jnp.einsum('kjw,ochk->hwcjo', aw_win, w.astype(f32))    # (K, W, Cin, Wo, Cout)
    wk2 = wk2.reshape(K, W * Cin, Nout)
    wk2 = jnp.pad(wk2, ((0, 0), (0, 0), (0, Nout_pad - Nout)))    # (K, W*Cin, Nout_pad)

    # Bias replicated per output column so it adds directly onto the lane-dense slab.
    b2 = jnp.tile(bias.astype(f32), (Wo,))
    b2 = jnp.pad(b2, (0, Nout_pad - Nout)).reshape(1, Nout_pad)

    # NCHW -> (G, nb*H, W*Cin): channels minor, nb images stacked along rows (layout glue).
    x2d = jnp.transpose(x, (0, 2, 3, 1)).reshape(G, nb * H, W * Cin).astype(f32)

    kernel = functools.partial(_deconv_kernel, k_taps=K, rows_per_tap=rows_per_tap)
    out = pl.pallas_call(
        kernel,
        out_shape=jax.ShapeDtypeStruct((G, rows_per_tap, Nout_pad), f32),
        grid=(G,),
        in_specs=[
            pl.BlockSpec((None, nb * H, W * Cin), lambda g: (g, 0, 0)),     # x (per step)
            pl.BlockSpec((K * rows_per_tap, nb * H), lambda g: (0, 0)),     # A_stack (shared)
            pl.BlockSpec((K, W * Cin, Nout_pad), lambda g: (0, 0, 0)),      # banded weights
            pl.BlockSpec((1, Nout_pad), lambda g: (0, 0)),                  # bias
        ],
        out_specs=pl.BlockSpec((None, rows_per_tap, Nout_pad), lambda g: (g, 0, 0)),
        compiler_params=pltpu.CompilerParams(
            dimension_semantics=("parallel",)),      # v7x: 2 TCs split the grid
    )(x2d, a_stack, wk2, b2)

    # Padded lane-dense slab -> NCHW, dropping row/lane pads (wrapper-side layout glue).
    out = out.reshape(G, nb, Ho_pad, Nout_pad)[:, :, :Ho, :Nout]
    out = out.reshape(B, Ho, Wo, Cout).transpose(0, 3, 1, 2)
    return out


# ---------------------------- pure-JAX reference (test harness only) ----------------------------

def _deconv_reference(x, w, bias, *, kernel_size=3, padding=0):
    if x.ndim == 3:
        x = x[None]
    B, Cin, H, W = x.shape
    a_h = _interp_matrix(H, 2 * H)
    a_w = _interp_matrix(W, 2 * W)
    up = jnp.einsum('ph,qw,bchw->bcpq', a_h, a_w, x)
    out = jax.lax.conv_general_dilated(
        up, w, window_strides=(1, 1),
        padding=[(padding, padding), (padding, padding)],
        dimension_numbers=('NCHW', 'OIHW', 'NCHW'))
    return out + bias[None, :, None, None]


# ---------------------------- main ----------------------------

if __name__ == "__main__":
    key = jax.random.PRNGKey(0)
    B, Cin, Cout, H, W = 2, 4, 8, 16, 16

    kx, kw_, kb = jax.random.split(key, 3)
    x = jax.random.normal(kx, (B, Cin, H, W), jnp.float32)
    bound = 1.0 / math.sqrt(Cin * 3 * 3)
    w = jax.random.uniform(kw_, (Cout, Cin, 3, 3), jnp.float32, -bound, bound)
    bias = jax.random.uniform(kb, (Cout,), jnp.float32, -bound, bound)

    # images_per_step=1 keeps a 2-way batch split across v7x TensorCores; set >1 on
    # single-TC chips (v5e/v6e) to amortize per-grid-step overhead.
    out = jax.block_until_ready(deconv_forward(x, w, bias, images_per_step=1))
    assert out.shape == (B, Cout, 2 * H - 2, 2 * W - 2), out.shape

    ref = jax.block_until_ready(_deconv_reference(x, w, bias))
    err = float(jnp.max(jnp.abs(out - ref)))
    # All-f32 kernel (no bf16 conv operands anymore) -> tight tolerance.
    assert err < 1e-3, f"max abs err {err}"

    print("KERNEL_OK")
</pallas_src>

<mosaic_0001>
module attributes {stable_mosaic.version = 11 : i64} {
  func.func @_deconv_kernel(%arg0: i32, %arg1: memref<1x16x64xf32, #tpu.memory_space<vmem>>, %arg2: memref<96x16xf32, #tpu.memory_space<vmem>>, %arg3: memref<3x64x256xf32, #tpu.memory_space<vmem>>, %arg4: memref<1x256xf32, #tpu.memory_space<vmem>>, %arg5: memref<1x32x256xf32, #tpu.memory_space<vmem>>) attributes {dimension_semantics = [#tpu.dimension_semantics<parallel>], iteration_bounds = array<i64: 2>, scalar_prefetch = 0 : i64, scratch_operands = 0 : i64, tpu.core_type = #tpu.core_type<tc>, window_params = [{transform_indices = @transform_0, window_bounds = array<i64: 1, 16, 64>}, {pipeline_mode = #tpu.pipeline_mode<synchronous>, transform_indices = @transform_1, window_bounds = array<i64: 96, 16>}, {pipeline_mode = #tpu.pipeline_mode<synchronous>, transform_indices = @transform_2, window_bounds = array<i64: 3, 64, 256>}, {pipeline_mode = #tpu.pipeline_mode<synchronous>, transform_indices = @transform_3, window_bounds = array<i64: 1, 256>}, {transform_indices = @transform_4, window_bounds = array<i64: 1, 32, 256>}]} {
    %c0 = arith.constant 0 : index
    %c0_0 = arith.constant 0 : index
    %0 = vector.load %arg2[%c0, %c0_0] : memref<96x16xf32, #tpu.memory_space<vmem>>, vector<96x16xf32>
    %c0_1 = arith.constant 0 : index
    %c0_2 = arith.constant 0 : index
    %c0_3 = arith.constant 0 : index
    %1 = vector.load %arg1[%c0_1, %c0_2, %c0_3] : memref<1x16x64xf32, #tpu.memory_space<vmem>>, vector<1x16x64xf32>
    %2 = vector.shape_cast %1 : vector<1x16x64xf32> to vector<16x64xf32>
    %cst = arith.constant dense<0.000000e+00> : vector<96x64xf32>
    %3 = tpu.matmul %0, %2, %cst {dimension_numbers = #tpu.dot_dimension_numbers<[1], [0], [0], [1], [0, 0, 1, 1], [], []>} : vector<96x16xf32>, vector<16x64xf32>, vector<96x64xf32> -> vector<96x64xf32>
    %4 = vector.extract_strided_slice %3 {offsets = [0, 0], sizes = [32, 64], strides = [1, 1]} : vector<96x64xf32> to vector<32x64xf32>
    %c0_4 = arith.constant 0 : index
    %c0_5 = arith.constant 0 : index
    %c0_6 = arith.constant 0 : index
    %5 = vector.load %arg3[%c0_4, %c0_5, %c0_6] : memref<3x64x256xf32, #tpu.memory_space<vmem>>, vector<1x64x256xf32>
    %6 = vector.shape_cast %5 : vector<1x64x256xf32> to vector<64x256xf32>
    %cst_7 = arith.constant dense<0.000000e+00> : vector<32x256xf32>
    %7 = tpu.matmul %4, %6, %cst_7 {dimension_numbers = #tpu.dot_dimension_numbers<[1], [0], [0], [1], [0, 0, 1, 1], [], []>} : vector<32x64xf32>, vector<64x256xf32>, vector<32x256xf32> -> vector<32x256xf32>
    %8 = vector.extract_strided_slice %3 {offsets = [32, 0], sizes = [32, 64], strides = [1, 1]} : vector<96x64xf32> to vector<32x64xf32>
    %c1 = arith.constant 1 : index
    %c0_8 = arith.constant 0 : index
    %c0_9 = arith.constant 0 : index
    %9 = vector.load %arg3[%c1, %c0_8, %c0_9] : memref<3x64x256xf32, #tpu.memory_space<vmem>>, vector<1x64x256xf32>
    %10 = vector.shape_cast %9 : vector<1x64x256xf32> to vector<64x256xf32>
    %cst_10 = arith.constant dense<0.000000e+00> : vector<32x256xf32>
    %11 = tpu.matmul %8, %10, %cst_10 {dimension_numbers = #tpu.dot_dimension_numbers<[1], [0], [0], [1], [0, 0, 1, 1], [], []>} : vector<32x64xf32>, vector<64x256xf32>, vector<32x256xf32> -> vector<32x256xf32>
    %12 = arith.addf %7, %11 : vector<32x256xf32>
    %13 = vector.extract_strided_slice %3 {offsets = [64, 0], sizes = [32, 64], strides = [1, 1]} : vector<96x64xf32> to vector<32x64xf32>
    %c2 = arith.constant 2 : index
    %c0_11 = arith.constant 0 : index
    %c0_12 = arith.constant 0 : index
    %14 = vector.load %arg3[%c2, %c0_11, %c0_12] : memref<3x64x256xf32, #tpu.memory_space<vmem>>, vector<1x64x256xf32>
    %15 = vector.shape_cast %14 : vector<1x64x256xf32> to vector<64x256xf32>
    %cst_13 = arith.constant dense<0.000000e+00> : vector<32x256xf32>
    %16 = tpu.matmul %13, %15, %cst_13 {dimension_numbers = #tpu.dot_dimension_numbers<[1], [0], [0], [1], [0, 0, 1, 1], [], []>} : vector<32x64xf32>, vector<64x256xf32>, vector<32x256xf32> -> vector<32x256xf32>
    %17 = arith.addf %12, %16 : vector<32x256xf32>
    %c0_14 = arith.constant 0 : index
    %c0_15 = arith.constant 0 : index
    %18 = vector.load %arg4[%c0_14, %c0_15] : memref<1x256xf32, #tpu.memory_space<vmem>>, vector<1x256xf32>
    %19 = vector.broadcast %18 : vector<1x256xf32> to vector<32x256xf32>
    %20 = arith.addf %17, %19 : vector<32x256xf32>
    %c0_16 = arith.constant 0 : index
    %c0_17 = arith.constant 0 : index
    %c0_18 = arith.constant 0 : index
    %21 = vector.load %arg5[%c0_16, %c0_17, %c0_18] : memref<1x32x256xf32, #tpu.memory_space<vmem>>, vector<1x32x256xf32>
    %22 = vector.shape_cast %21 : vector<1x32x256xf32> to vector<32x256xf32>
    %23 = vector.shape_cast %20 : vector<32x256xf32> to vector<1x32x256xf32>
    tpu.vector_store %arg5[%c0_16, %c0_17, %c0_18], %23 {strides = array<i32>} : memref<1x32x256xf32, #tpu.memory_space<vmem>>, vector<1x32x256xf32>,
    return
  }
  func.func @transform_0(%arg0: i32) -> (i32, i32, i32) {
    %c0_i32 = arith.constant 0 : i32
    %c0_i32_0 = arith.constant 0 : i32
    %c0_i32_1 = arith.constant 0 : i32
    return %arg0, %c0_i32, %c0_i32_0 : i32, i32, i32
  }
  func.func @transform_1(%arg0: i32) -> (i32, i32) {
    %c0_i32 = arith.constant 0 : i32
    %c0_i32_0 = arith.constant 0 : i32
    %c0_i32_1 = arith.constant 0 : i32
    return %c0_i32, %c0_i32_0 : i32, i32
  }
  func.func @transform_2(%arg0: i32) -> (i32, i32, i32) {
    %c0_i32 = arith.constant 0 : i32
    %c0_i32_0 = arith.constant 0 : i32
    %c0_i32_1 = arith.constant 0 : i32
    %c0_i32_2 = arith.constant 0 : i32
    return %c0_i32, %c0_i32_0, %c0_i32_1 : i32, i32, i32
  }
  func.func @transform_3(%arg0: i32) -> (i32, i32) {
    %c0_i32 = arith.constant 0 : i32
    %c0_i32_0 = arith.constant 0 : i32
    %c0_i32_1 = arith.constant 0 : i32
    return %c0_i32, %c0_i32_0 : i32, i32
  }
  func.func @transform_4(%arg0: i32) -> (i32, i32, i32) {
    %c0_i32 = arith.constant 0 : i32
    %c0_i32_0 = arith.constant 0 : i32
    %c0_i32_1 = arith.constant 0 : i32
    return %arg0, %c0_i32, %c0_i32_0 : i32, i32, i32
  }
}

</mosaic_0001>

<llo_original>
// kernel: tpu_custom_call.1
$region0: #{tpu_custom_call.1}
  #allocation0 [shape = 'u32[]', space=smem, size = 0x4, offset = 0x4, fixed_abs, tag = 'smem constant byte address 0x4 - core index']
  #allocation1 [shape = 'u32[144,128]{1,0:T(1,128)}', space=vmem, size = 0x12000, scoped, tag = 'internal scratch']
  %s0 = inlined_call_operand.vmem [shape: f32[2,16,64], index: 0, kind: input, shape index: {}]
  %s1 = inlined_call_operand.vmem [shape: f32[96,16], index: 1, kind: input, shape index: {}]
  %s2 = inlined_call_operand.hbm [shape: f32[3,64,256], index: 2, kind: input, shape index: {}]
  %s3 = inlined_call_operand.vmem [shape: f32[1,256], index: 3, kind: input, shape index: {}]
  %s4 = inlined_call_operand.hbm [shape: f32[2,32,256], index: 4, kind: output, shape index: {}]
  %s5 = sld [smem:[#allocation0]]
  $region53: #{tpu_custom_call.1} parent=0
    _
  %s7 = ssub.s32 1, %s5
  %s8 = scalar_select 0, %s7, %s5
  $region1: #{tpu_custom_call.1} parent=0
    #allocation2 [shape = 'u8[196608]{0}', space=vmem, size = 0x30000, scoped, tag = 'input window, operand 2, single buffered']
    #allocation3 [shape = 's32[2]{0}', space=sflag, size = 0x8, scoped, tag = 'scoped memory for tpu_custom_call.1']
    #allocation4 [shape = 's32[2]{0}', space=sflag, size = 0x8, scoped, tag = 'scoped memory for tpu_custom_call.1']
    #allocation5 [shape = 'u8[65536]{0}', space=vmem, size = 0x10000, scoped, tag = 'output window, operand 0']
    %9 = vsyncpa [#allocation3], 0
    %10 = vsyncpa [#allocation4], 0
    %s11 = scalar_lea.sflag [#allocation4], 1
    %12 = vsyncpa %s11, 0
    loop: start=0, step=1, limit=4
    $region2: #{tpu_custom_call.1} parent=1 // loop_pre_header
      _
    $region3: #{tpu_custom_call.1} parent=1 // loop_header
      %s14 = sphi 0, %s18
      %p15 = scmp.ge.s32.totalorder %s14, 4
      %s24 = sphi 0, %s26
      %s27 = sphi 0, %s24
      %s28 = sphi 0, %s27
      %s44 = sphi 0, %s28
      %s48 = sphi 0, %s48
      %s50 = sphi 0, %s48
      %s51 = sphi 0, %s50
      %s65 = sphi 0, %s51
      %s69 = sphi 0, %s69
      %s71 = sphi 0, %s69
      %s72 = sphi 0, %s71
      %s86 = sphi 0, %s72
      %s90 = sphi 0, %s90
      %s92 = sphi 0, %s90
      %s93 = sphi 0, %s92
      %s107 = sphi 0, %s93
      %s113 = sphi 0, %s115
      %s116 = sphi 0, %s113
      %s117 = sphi 0, %s116
      %s133 = sphi 0, %s117
    $region4: #{tpu_custom_call.1} parent=1 // loop_header_branch
      %17 = sbr.rel (%p15) target = $region8
    $region5: #{tpu_custom_call.1} parent=1 // loop_body
      %s19 = ssub.s32 %s14, 1
      %s20 = ssub.s32 %s14, 2
      %s21 = sadd.s32 %s14, 1
      %s22 = ssub.s32 %s14, %s21
      %p23 = scmp.eq.s32.totalorder %s22, 0
      %s25 = sadd.s32 %s24, 1
      %s26 = scalar_select %p23, %s24, %s25
      %p29 = pneg %p23
      %p30 = scmp.eq.s32.totalorder %s14, 1
      %p31 = por %p29, %p30
      %p32 = scmp.ne.s32.totalorder %s24, %s27
      %p33 = scmp.eq.s32.totalorder %s14, 0
      %p34 = por %p32, %p33
      %p35 = scmp.ne.s32.totalorder %s24, %s27
      %p36 = scmp.eq.s32.totalorder %s19, 1
      %p37 = por %p35, %p36
      %p38 = scmp.ne.s32.totalorder %s27, %s28
      %p39 = scmp.eq.s32.totalorder %s19, 0
      %p40 = por %p38, %p39
      %p41 = scmp.ne.s32.totalorder %s27, %s28
      %p42 = scmp.eq.s32.totalorder %s20, 1
      %p43 = por %p41, %p42
      %p45 = scmp.ne.s32.totalorder %s28, %s44
      %p46 = scmp.eq.s32.totalorder %s20, 0
      %p47 = por %p45, %p46
      %s49 = sadd.s32 %s48, 1
      %p52 = scmp.eq.s32.totalorder %s14, 1
      %p53 = scmp.ne.s32.totalorder %s48, %s50
      %p54 = scmp.eq.s32.totalorder %s14, 0
      %p55 = por %p53, %p54
      %p56 = scmp.ne.s32.totalorder %s48, %s50
      %p57 = scmp.eq.s32.totalorder %s19, 1
      %p58 = por %p56, %p57
      %p59 = scmp.ne.s32.totalorder %s50, %s51
      %p60 = scmp.eq.s32.totalorder %s19, 0
      %p61 = por %p59, %p60
      %p62 = scmp.ne.s32.totalorder %s50, %s51
      %p63 = scmp.eq.s32.totalorder %s20, 1
      %p64 = por %p62, %p63
      %p66 = scmp.ne.s32.totalorder %s51, %s65
      %p67 = scmp.eq.s32.totalorder %s20, 0
      %p68 = por %p66, %p67
      %s70 = sadd.s32 %s69, 1
      %p73 = scmp.eq.s32.totalorder %s14, 1
      %p74 = scmp.ne.s32.totalorder %s69, %s71
      %p75 = scmp.eq.s32.totalorder %s14, 0
      %p76 = por %p74, %p75
      %p77 = scmp.ne.s32.totalorder %s69, %s71
      %p78 = scmp.eq.s32.totalorder %s19, 1
      %p79 = por %p77, %p78
      %p80 = scmp.ne.s32.totalorder %s71, %s72
      %p81 = scmp.eq.s32.totalorder %s19, 0
      %p82 = por %p80, %p81
      %p83 = scmp.ne.s32.totalorder %s71, %s72
      %p84 = scmp.eq.s32.totalorder %s20, 1
      %p85 = por %p83, %p84
      %p87 = scmp.ne.s32.totalorder %s72, %s86
      %p88 = scmp.eq.s32.totalorder %s20, 0
      %p89 = por %p87, %p88
      %s91 = sadd.s32 %s90, 1
      %p94 = scmp.eq.s32.totalorder %s14, 1
      %p95 = scmp.ne.s32.totalorder %s90, %s92
      %p96 = scmp.eq.s32.totalorder %s14, 0
      %p97 = por %p95, %p96
      %p98 = scmp.ne.s32.totalorder %s90, %s92
      %p99 = scmp.eq.s32.totalorder %s19, 1
      %p100 = por %p98, %p99
      %p101 = scmp.ne.s32.totalorder %s92, %s93
      %p102 = scmp.eq.s32.totalorder %s19, 0
      %p103 = por %p101, %p102
      %p104 = scmp.ne.s32.totalorder %s92, %s93
      %p105 = scmp.eq.s32.totalorder %s20, 1
      %p106 = por %p104, %p105
      %p108 = scmp.ne.s32.totalorder %s93, %s107
      %p109 = scmp.eq.s32.totalorder %s20, 0
      %p110 = por %p108, %p109
      %s111 = ssub.s32 %s14, %s21
      %p112 = scmp.eq.s32.totalorder %s111, 0
      %s114 = sadd.s32 %s113, 1
      %s115 = scalar_select %p112, %s113, %s114
      %p118 = pneg %p112
      %p119 = scmp.eq.s32.totalorder %s14, 1
      %p120 = por %p118, %p119
      %p121 = scmp.ne.s32.totalorder %s113, %s116
      %p122 = scmp.eq.s32.totalorder %s14, 0
      %p123 = por %p121, %p122
      %p124 = scmp.ne.s32.totalorder %s113, %s116
      %p125 = scmp.eq.s32.totalorder %s19, 1
      %p126 = por %p124, %p125
      %p127 = scmp.ne.s32.totalorder %s116, %s117
      %p128 = scmp.eq.s32.totalorder %s19, 0
      %p129 = por %p127, %p128
      %p130 = scmp.ne.s32.totalorder %s116, %s117
      %p131 = scmp.eq.s32.totalorder %s20, 1
      %p132 = por %p130, %p131
      %p134 = scmp.ne.s32.totalorder %s117, %s133
      %p135 = scmp.eq.s32.totalorder %s20, 0
      %p136 = por %p134, %p135
      %p137 = scmp.le.s32.totalorder 1, %s14
      %p138 = scmp.lt.s32.totalorder %s14, 3
      %p139 = pnand %p137, %p138
      %p140 = pneg %p139
      // Predicated region
      $region9: #{tpu_custom_call.1} parent=5 // pred_check
        _
      $region10: #{tpu_custom_call.1} parent=5 // pred_check_branch
        %142 = sbr.rel (%p139) target = $region12
      $region11: #{tpu_custom_call.1} parent=5 // pred_region
        %s143 = ssub.s32 %s14, 1
        // Predicated region
        $region13: #{tpu_custom_call.1} parent=11 // pred_check
          %p144 = pneg %p61
        $region14: #{tpu_custom_call.1} parent=11 // pred_check_branch
          %146 = sbr.rel (%p144) target = $region16
        $region15: #{tpu_custom_call.1} parent=11 // pred_region
          _
        $region16: #{tpu_custom_call.1} parent=11 // pred_fallthru
          _
        // Predicated region
        $region17: #{tpu_custom_call.1} parent=11 // pred_check
          %p147 = pneg %p82
        $region18: #{tpu_custom_call.1} parent=11 // pred_check_branch
          %149 = sbr.rel (%p147) target = $region20
        $region19: #{tpu_custom_call.1} parent=11 // pred_region
          %s151 = ssub.s32 6144, 6144
          %152 = vsyncadd [#allocation3], %s151
          %s153 = sshll.u32 [#allocation2], 4
          %s154 = int_to_ptr.vmem [resolvable:$true] %s153
          %159 = dma.hbm_to_vmem [thread:$0]  %s2, 6144, %s154, [#allocation3], 256, 256, 16
        $region20: #{tpu_custom_call.1} parent=11 // pred_fallthru
          _
        // Predicated region
        $region21: #{tpu_custom_call.1} parent=11 // pred_check
          %p160 = pneg %p103
        $region22: #{tpu_custom_call.1} parent=11 // pred_check_branch
          %162 = sbr.rel (%p160) target = $region24
        $region23: #{tpu_custom_call.1} parent=11 // pred_region
          _
        $region24: #{tpu_custom_call.1} parent=11 // pred_fallthru
          _
      $region12: #{tpu_custom_call.1} parent=5 // pred_fallthru
        _
      %p163 = scmp.lt.s32.totalorder %s14, 2
      // Predicated region
      $region25: #{tpu_custom_call.1} parent=5 // pred_check
        %p164 = pneg %p163
      $region26: #{tpu_custom_call.1} parent=5 // pred_check_branch
        %166 = sbr.rel (%p164) target = $region28
      $region27: #{tpu_custom_call.1} parent=5 // pred_region
        // Predicated region
        $region29: #{tpu_custom_call.1} parent=27 // pred_check
          %p167 = pneg %p34
        $region30: #{tpu_custom_call.1} parent=27 // pred_check_branch
          %169 = sbr.rel (%p167) target = $region32
        $region31: #{tpu_custom_call.1} parent=27 // pred_region
          %p170 = scmp.lt.s32.totalorder %s14, 1
          %s171 = scalar_select %p170, %s14, 1
          %s172 = smul.addr %s171, 2
          %s173 = smul.addr %s172, 8
          %s174 = scalar_lea.vmem %s0, %s173
        $region32: #{tpu_custom_call.1} parent=27 // pred_fallthru
          _
      $region28: #{tpu_custom_call.1} parent=5 // pred_fallthru
        _
      %p175 = scmp.le.s32.totalorder 1, %s14
      %p176 = scmp.lt.s32.totalorder %s14, 3
      %p177 = pnand %p175, %p176
      %p178 = pneg %p177
      // Predicated region
      $region33: #{tpu_custom_call.1} parent=5 // pred_check
        _
      $region34: #{tpu_custom_call.1} parent=5 // pred_check_branch
        %180 = sbr.rel (%p177) target = $region36
      $region35: #{tpu_custom_call.1} parent=5 // pred_region
        %s181 = ssub.s32 %s14, 1
        // Predicated region
        $region37: #{tpu_custom_call.1} parent=35 // pred_check
          %p182 = pneg %p82
        $region38: #{tpu_custom_call.1} parent=35 // pred_check_branch
          %184 = sbr.rel (%p182) target = $region40
        $region39: #{tpu_custom_call.1} parent=35 // pred_region
          %185 = dma.done [#allocation3], 6144
        $region40: #{tpu_custom_call.1} parent=35 // pred_fallthru
          _
        %p186 = scmp.lt.s32.totalorder %s19, 1
        %s187 = scalar_select %p186, %s19, 1
        %s188 = smul.addr %s187, 2
        %s189 = smul.addr %s188, 8
        %s190 = scalar_lea.vmem %s0, %s189
        %p191 = pneg %p40
        %p192 = pneg %p37
        %p193 = pneg %p61
        %p194 = pneg %p58
        %p195 = pneg %p82
        %p196 = pneg %p79
        %p197 = pneg %p103
        %p198 = pneg %p100
        %p199 = pneg %p129
        %p200 = pneg %p126
        %s201 = sand.u32 %s116, 1
        %s202 = scalar_lea.sflag [#allocation4], %s201
        %s203 = sand.u32 %s116, 1
        %s204 = smul.addr %s203, 64
        %s205 = scalar_lea.vmem [#allocation5], %s204
        %p206 = scmp.lt.s32.totalorder %s19, 1
        %s207 = scalar_select %p206, %s19, 1
        %s208 = smul.addr %s207, 2
        %s209 = smul.addr %s208, 8
        %s210 = scalar_lea.vmem %s0, %s209
        %v211 = vld [vmem:[%s1] sm:$0xff]
        %v212 = vld [vmem:[%s1 + $0x8] sm:$0xff]
        %v213 = vld [vmem:[%s1 + $0x10] sm:$0xff]
        %v214 = vld [vmem:[%s1 + $0x18] sm:$0xff]
        %v215 = vld [vmem:[%s1 + $0x20] sm:$0xff]
        %v216 = vld [vmem:[%s1 + $0x28] sm:$0xff]
        %v217 = vld [vmem:[%s1 + $0x30] sm:$0xff]
        %v218 = vld [vmem:[%s1 + $0x38] sm:$0xff]
        %v219 = vld [vmem:[%s1 + $0x40] sm:$0xff]
        %v220 = vld [vmem:[%s1 + $0x48] sm:$0xff]
        %v221 = vld [vmem:[%s1 + $0x50] sm:$0xff]
        %v222 = vld [vmem:[%s1 + $0x58] sm:$0xff]
        %v223 = vld [vmem:[%s210] sm:$0xff]
        %v224 = vld [vmem:[%s210 + $0x8] sm:$0xff]
        %vm225 = vcmask 130048
        %v227 = vsel %vm225, %v211, 0
        %v230 = vsel %vm225, %v212, 0
        %v233 = vsel %vm225, %v213, 0
        %v236 = vsel %vm225, %v214, 0
        %v239 = vsel %vm225, %v215, 0
        %v242 = vsel %vm225, %v216, 0
        %v245 = vsel %vm225, %v217, 0
        %v248 = vsel %vm225, %v218, 0
        %v251 = vsel %vm225, %v219, 0
        %v254 = vsel %vm225, %v220, 0
        %v257 = vsel %vm225, %v221, 0
        %v260 = vsel %vm225, %v222, 0
        %262 = vmatprep.subr.mxu0 0.0
        %263 = vmatpush1.msra.mxu0 %v223
        %264 = vmatprep.subr.mxu0 0.0
        %265 = vmatpush1.msra.mxu0 %v224
        %266 = vmatprep.subr.mxu0 0.0
        %267 = vmatpush1.msra.mxu0 0.0
        %268 = vmatprep.subr.mxu0 0.0
        %269 = vmatpush1.msra.mxu0 0.0
        %270 = vmatprep.subr.mxu0 0.0
        %271 = vmatpush1.msra.mxu0 0.0
        %272 = vmatprep.subr.mxu0 0.0
        %273 = vmatpush1.msra.mxu0 0.0
        %274 = vmatprep.subr.mxu0 0.0
        %275 = vmatpush1.msra.mxu0 0.0
        %276 = vmatprep.subr.mxu0 0.0
        %277 = vmatpush1.msra.mxu0 0.0
        %278 = vmatprep.subr.mxu0 0.0
        %279 = vmatpush1.msra.mxu0 0.0
        %280 = vmatprep.subr.mxu0 0.0
        %281 = vmatpush1.msra.mxu0 0.0
        %282 = vmatprep.subr.mxu0 0.0
        %283 = vmatpush1.msra.mxu0 0.0
        %284 = vmatprep.subr.mxu0 0.0
        %285 = vmatpush1.msra.mxu0 0.0
        %286 = vmatprep.subr.mxu0 0.0
        %287 = vmatpush1.msra.mxu0 0.0
        %288 = vmatprep.subr.mxu0 0.0
        %289 = vmatpush1.msra.mxu0 0.0
        %290 = vmatprep.subr.mxu0 0.0
        %291 = vmatpush1.msra.mxu0 0.0
        %292 = vmatprep.subr.mxu0 0.0
        %293 = vmatpush1.msra.mxu0 0.0
        %294 = vmatprep.subr.mxu0 0.0
        %295 = vmatpush1.msra.mxu0 0.0
        %296 = vmatprep.subr.mxu0 0.0
        %297 = vmatpush1.msra.mxu0 0.0
        %298 = vmatprep.subr.mxu0 0.0
        %299 = vmatpush1.msra.mxu0 0.0
        %300 = vmatprep.subr.mxu0 0.0
        %301 = vmatpush1.msra.mxu0 0.0
        %302 = vmatprep.subr.mxu0 0.0
        %303 = vmatpush1.msra.mxu0 0.0
        %304 = vmatprep.subr.mxu0 0.0
        %305 = vmatpush1.msra.mxu0 0.0
        %306 = vmatprep.subr.mxu0 0.0
        %307 = vmatpush1.msra.mxu0 0.0
        %308 = vmatprep.subr.mxu0 0.0
        %309 = vmatpush1.msra.mxu0 0.0
        %310 = vmatprep.subr.mxu0 0.0
        %311 = vmatpush1.msra.mxu0 0.0
        %312 = vmatprep.subr.mxu0 0.0
        %313 = vmatpush1.msra.mxu0 0.0
        %314 = vmatprep.subr.mxu0 0.0
        %315 = vmatpush1.msra.mxu0 0.0
        %316 = vmatprep.subr.mxu0 0.0
        %317 = vmatpush1.msra.mxu0 0.0
        %318 = vmatprep.subr.mxu0 0.0
        %319 = vmatpush1.msra.mxu0 0.0
        %320 = vmatprep.subr.mxu0 0.0
        %321 = vmatpush1.msra.mxu0 0.0
        %322 = vmatprep.subr.mxu0 0.0
        %323 = vmatpush1.msra.mxu0 0.0
        %324 = vmatprep.subr.mxu0 0.0
        %325 = vmatpush1.msra.mxu0 0.0
        %326 = vmatprep.mubr.f32.mxu0 0.0
        %327 = vmatmul.mubr.f32.gmra.mrb[0].mxu0 %v227
        %v328 = vpop.f32.mrb[0].mxu0
        %v329 = vadd.f32 0.0, %v328
        %v330 = vpop.f32.mrb[0].mxu0
        %331 = vmatprep.mubr.f32.mxu0 0.0
        %332 = vmatmul.mubr.f32.gmra.mrb[0].mxu0 %v230
        %v333 = vpop.f32.mrb[0].mxu0
        %v334 = vadd.f32 0.0, %v333
        %v335 = vpop.f32.mrb[0].mxu0
        %336 = vmatprep.mubr.f32.mxu0 0.0
        %337 = vmatmul.mubr.f32.gmra.mrb[0].mxu0 %v233
        %v338 = vpop.f32.mrb[0].mxu0
        %v339 = vadd.f32 0.0, %v338
        %v340 = vpop.f32.mrb[0].mxu0
        %341 = vmatprep.mubr.f32.mxu0 0.0
        %342 = vmatmul.mubr.f32.gmra.mrb[0].mxu0 %v236
        %v343 = vpop.f32.mrb[0].mxu0
        %v344 = vadd.f32 0.0, %v343
        %v345 = vpop.f32.mrb[0].mxu0
        %346 = vmatprep.mubr.f32.mxu0 0.0
        %347 = vmatmul.mubr.f32.gmra.mrb[0].mxu0 %v239
        %v348 = vpop.f32.mrb[0].mxu0
        %v349 = vadd.f32 0.0, %v348
        %v350 = vpop.f32.mrb[0].mxu0
        %351 = vmatprep.mubr.f32.mxu0 0.0
        %352 = vmatmul.mubr.f32.gmra.mrb[0].mxu0 %v242
        %v353 = vpop.f32.mrb[0].mxu0
        %v354 = vadd.f32 0.0, %v353
        %v355 = vpop.f32.mrb[0].mxu0
        %356 = vmatprep.mubr.f32.mxu0 0.0
        %357 = vmatmul.mubr.f32.gmra.mrb[0].mxu0 %v245
        %v358 = vpop.f32.mrb[0].mxu0
        %v359 = vadd.f32 0.0, %v358
        %v360 = vpop.f32.mrb[0].mxu0
        %361 = vmatprep.mubr.f32.mxu0 0.0
        %362 = vmatmul.mubr.f32.gmra.mrb[0].mxu0 %v248
        %v363 = vpop.f32.mrb[0].mxu0
        %v364 = vadd.f32 0.0, %v363
        %v365 = vpop.f32.mrb[0].mxu0
        %366 = vmatprep.mubr.f32.mxu0 0.0
        %367 = vmatmul.mubr.f32.gmra.mrb[0].mxu0 %v251
        %v368 = vpop.f32.mrb[0].mxu0
        %v369 = vadd.f32 0.0, %v368
        %v370 = vpop.f32.mrb[0].mxu0
        %371 = vmatprep.mubr.f32.mxu0 0.0
        %372 = vmatmul.mubr.f32.gmra.mrb[0].mxu0 %v254
        %v373 = vpop.f32.mrb[0].mxu0
        %v374 = vadd.f32 0.0, %v373
        %v375 = vpop.f32.mrb[0].mxu0
        %376 = vmatprep.mubr.f32.mxu0 0.0
        %377 = vmatmul.mubr.f32.gmra.mrb[0].mxu0 %v257
        %v378 = vpop.f32.mrb[0].mxu0
        %v379 = vadd.f32 0.0, %v378
        %v380 = vpop.f32.mrb[0].mxu0
        %381 = vmatprep.mubr.f32.mxu0 0.0
        %382 = vmatmul.mubr.f32.gmra.mrb[0].mxu0 %v260
        %v383 = vpop.f32.mrb[0].mxu0
        %v384 = vadd.f32 0.0, %v383
        %v385 = vpop.f32.mrb[0].mxu0
        %386 = vdwg.mxu0
        %v387 = vld [vmem:[#allocation2] sm:$0xff]
        %v388 = vld [vmem:[#allocation2 + $0x8] sm:$0xff]
        %v389 = vld [vmem:[#allocation2 + $0x10] sm:$0xff]
        %v390 = vld [vmem:[#allocation2 + $0x18] sm:$0xff]
        %v391 = vld [vmem:[#allocation2 + $0x20] sm:$0xff]
        %v392 = vld [vmem:[#allocation2 + $0x28] sm:$0xff]
        %v393 = vld [vmem:[#allocation2 + $0x30] sm:$0xff]
        %v394 = vld [vmem:[#allocation2 + $0x38] sm:$0xff]
        %v395 = vld [vmem:[#allocation2 + $0x40] sm:$0xff]
        %v396 = vld [vmem:[#allocation2 + $0x48] sm:$0xff]
        %v397 = vld [vmem:[#allocation2 + $0x50] sm:$0xff]
        %v398 = vld [vmem:[#allocation2 + $0x58] sm:$0xff]
        %v399 = vld [vmem:[#allocation2 + $0x60] sm:$0xff]
        %v400 = vld [vmem:[#allocation2 + $0x68] sm:$0xff]
        %v401 = vld [vmem:[#allocation2 + $0x70] sm:$0xff]
        %v402 = vld [vmem:[#allocation2 + $0x78] sm:$0xff]
        %s403 = scalar_lea.vmem [#allocation2], 128
        %v404 = vld [vmem:[%s403] sm:$0xff]
        %v405 = vld [vmem:[%s403 + $0x8] sm:$0xff]
        %v406 = vld [vmem:[%s403 + $0x10] sm:$0xff]
        %v407 = vld [vmem:[%s403 + $0x18] sm:$0xff]
        %v408 = vld [vmem:[%s403 + $0x20] sm:$0xff]
        %v409 = vld [vmem:[%s403 + $0x28] sm:$0xff]
        %v410 = vld [vmem:[%s403 + $0x30] sm:$0xff]
        %v411 = vld [vmem:[%s403 + $0x38] sm:$0xff]
        %v412 = vld [vmem:[%s403 + $0x40] sm:$0xff]
        %v413 = vld [vmem:[%s403 + $0x48] sm:$0xff]
        %v414 = vld [vmem:[%s403 + $0x50] sm:$0xff]
        %v415 = vld [vmem:[%s403 + $0x58] sm:$0xff]
        %v416 = vld [vmem:[%s403 + $0x60] sm:$0xff]
        %v417 = vld [vmem:[%s403 + $0x68] sm:$0xff]
        %v418 = vld [vmem:[%s403 + $0x70] sm:$0xff]
        %v419 = vld [vmem:[%s403 + $0x78] sm:$0xff]
        %vm420 = vcmask 523264
        %v422 = vsel %vm420, %v349, 0
        %v425 = vsel %vm420, %v354, 0
        %v428 = vsel %vm420, %v359, 0
        %v431 = vsel %vm420, %v364, 0
        %433 = vmatprep.subr.mxu0 %v405
        %434 = vmatpush1.msra.mxu0 %v404
        %435 = vmatprep.subr.mxu0 %v407
        %436 = vmatpush1.msra.mxu0 %v406
        %437 = vmatprep.subr.mxu0 %v409
        %438 = vmatpush1.msra.mxu0 %v408
        %439 = vmatprep.subr.mxu0 %v411
        %440 = vmatpush1.msra.mxu0 %v410
        %441 = vmatprep.subr.mxu0 %v413
        %442 = vmatpush1.msra.mxu0 %v412
        %443 = vmatprep.subr.mxu0 %v415
        %444 = vmatpush1.msra.mxu0 %v414
        %445 = vmatprep.subr.mxu0 %v417
        %446 = vmatpush1.msra.mxu0 %v416
        %447 = vmatprep.subr.mxu0 %v419
        %448 = vmatpush1.msra.mxu0 %v418
        %449 = vmatprep.subr.mxu0 0.0
        %450 = vmatpush1.msra.mxu0 0.0
        %451 = vmatprep.subr.mxu0 0.0
        %452 = vmatpush1.msra.mxu0 0.0
        %453 = vmatprep.subr.mxu0 0.0
        %454 = vmatpush1.msra.mxu0 0.0
        %455 = vmatprep.subr.mxu0 0.0
        %456 = vmatpush1.msra.mxu0 0.0
        %457 = vmatprep.subr.mxu0 0.0
        %458 = vmatpush1.msra.mxu0 0.0
        %459 = vmatprep.subr.mxu0 0.0
        %460 = vmatpush1.msra.mxu0 0.0
        %461 = vmatprep.subr.mxu0 0.0
        %462 = vmatpush1.msra.mxu0 0.0
        %463 = vmatprep.subr.mxu0 0.0
        %464 = vmatpush1.msra.mxu0 0.0
        %465 = vmatprep.subr.mxu0 0.0
        %466 = vmatpush1.msra.mxu0 0.0
        %467 = vmatprep.subr.mxu0 0.0
        %468 = vmatpush1.msra.mxu0 0.0
        %469 = vmatprep.subr.mxu0 0.0
        %470 = vmatpush1.msra.mxu0 0.0
        %471 = vmatprep.subr.mxu0 0.0
        %472 = vmatpush1.msra.mxu0 0.0
        %473 = vmatprep.subr.mxu0 0.0
        %474 = vmatpush1.msra.mxu0 0.0
        %475 = vmatprep.subr.mxu0 0.0
        %476 = vmatpush1.msra.mxu0 0.0
        %477 = vmatprep.subr.mxu0 0.0
        %478 = vmatpush1.msra.mxu0 0.0
        %479 = vmatprep.subr.mxu0 0.0
        %480 = vmatpush1.msra.mxu0 0.0
        %481 = vmatprep.subr.mxu0 0.0
        %482 = vmatpush1.msra.mxu0 0.0
        %483 = vmatprep.subr.mxu0 0.0
        %484 = vmatpush1.msra.mxu0 0.0
        %485 = vmatprep.subr.mxu0 0.0
        %486 = vmatpush1.msra.mxu0 0.0
        %487 = vmatprep.subr.mxu0 0.0
        %488 = vmatpush1.msra.mxu0 0.0
        %489 = vmatprep.subr.mxu0 0.0
        %490 = vmatpush1.msra.mxu0 0.0
        %491 = vmatprep.subr.mxu0 0.0
        %492 = vmatpush1.msra.mxu0 0.0
        %493 = vmatprep.subr.mxu0 0.0
        %494 = vmatpush1.msra.mxu0 0.0
        %495 = vmatprep.subr.mxu0 0.0
        %496 = vmatpush1.msra.mxu0 0.0
        %497 = vmatprep.mubr.f32.mxu0 0.0
        %498 = vmatmul.mubr.f32.gmra.mrb[0].mxu0 %v422
        %v499 = vpop.f32.mrb[0].mxu0
        %v500 = vadd.f32 0.0, %v499
        %v501 = vpop.f32.mrb[0].mxu0
        %v502 = vadd.f32 0.0, %v501
        %503 = vmatprep.mubr.f32.mxu0 0.0
        %504 = vmatmul.mubr.f32.gmra.mrb[0].mxu0 %v425
        %v505 = vpop.f32.mrb[0].mxu0
        %v506 = vadd.f32 0.0, %v505
        %v507 = vpop.f32.mrb[0].mxu0
        %v508 = vadd.f32 0.0, %v507
        %509 = vmatprep.mubr.f32.mxu0 0.0
        %510 = vmatmul.mubr.f32.gmra.mrb[0].mxu0 %v428
        %v511 = vpop.f32.mrb[0].mxu0
        %v512 = vadd.f32 0.0, %v511
        %v513 = vpop.f32.mrb[0].mxu0
        %v514 = vadd.f32 0.0, %v513
        %515 = vmatprep.mubr.f32.mxu0 0.0
        %516 = vmatmul.mubr.f32.gmra.mrb[0].mxu0 %v431
        %v517 = vpop.f32.mrb[0].mxu0
        %v518 = vadd.f32 0.0, %v517
        %v519 = vpop.f32.mrb[0].mxu0
        %v520 = vadd.f32 0.0, %v519
        %521 = vdwg.mxu0
        %v523 = vsel %vm420, %v329, 0
        %v526 = vsel %vm420, %v334, 0
        %v529 = vsel %vm420, %v339, 0
        %v532 = vsel %vm420, %v344, 0
        %534 = vmatprep.subr.mxu0 %v388
        %535 = vmatpush1.msra.mxu0 %v387
        %536 = vmatprep.subr.mxu0 %v390
        %537 = vmatpush1.msra.mxu0 %v389
        %538 = vmatprep.subr.mxu0 %v392
        %539 = vmatpush1.msra.mxu0 %v391
        %540 = vmatprep.subr.mxu0 %v394
        %541 = vmatpush1.msra.mxu0 %v393
        %542 = vmatprep.subr.mxu0 %v396
        %543 = vmatpush1.msra.mxu0 %v395
        %544 = vmatprep.subr.mxu0 %v398
        %545 = vmatpush1.msra.mxu0 %v397
        %546 = vmatprep.subr.mxu0 %v400
        %547 = vmatpush1.msra.mxu0 %v399
        %548 = vmatprep.subr.mxu0 %v402
        %549 = vmatpush1.msra.mxu0 %v401
        %550 = vmatprep.subr.mxu0 0.0
        %551 = vmatpush1.msra.mxu0 0.0
        %552 = vmatprep.subr.mxu0 0.0
        %553 = vmatpush1.msra.mxu0 0.0
        %554 = vmatprep.subr.mxu0 0.0
        %555 = vmatpush1.msra.mxu0 0.0
        %556 = vmatprep.subr.mxu0 0.0
        %557 = vmatpush1.msra.mxu0 0.0
        %558 = vmatprep.subr.mxu0 0.0
        %559 = vmatpush1.msra.mxu0 0.0
        %560 = vmatprep.subr.mxu0 0.0
        %561 = vmatpush1.msra.mxu0 0.0
        %562 = vmatprep.subr.mxu0 0.0
        %563 = vmatpush1.msra.mxu0 0.0
        %564 = vmatprep.subr.mxu0 0.0
        %565 = vmatpush1.msra.mxu0 0.0
        %566 = vmatprep.subr.mxu0 0.0
        %567 = vmatpush1.msra.mxu0 0.0
        %568 = vmatprep.subr.mxu0 0.0
        %569 = vmatpush1.msra.mxu0 0.0
        %570 = vmatprep.subr.mxu0 0.0
        %571 = vmatpush1.msra.mxu0 0.0
        %572 = vmatprep.subr.mxu0 0.0
        %573 = vmatpush1.msra.mxu0 0.0
        %574 = vmatprep.subr.mxu0 0.0
        %575 = vmatpush1.msra.mxu0 0.0
        %576 = vmatprep.subr.mxu0 0.0
        %577 = vmatpush1.msra.mxu0 0.0
        %578 = vmatprep.subr.mxu0 0.0
        %579 = vmatpush1.msra.mxu0 0.0
        %580 = vmatprep.subr.mxu0 0.0
        %581 = vmatpush1.msra.mxu0 0.0
        %582 = vmatprep.subr.mxu0 0.0
        %583 = vmatpush1.msra.mxu0 0.0
        %584 = vmatprep.subr.mxu0 0.0
        %585 = vmatpush1.msra.mxu0 0.0
        %586 = vmatprep.subr.mxu0 0.0
        %587 = vmatpush1.msra.mxu0 0.0
        %588 = vmatprep.subr.mxu0 0.0
        %589 = vmatpush1.msra.mxu0 0.0
        %590 = vmatprep.subr.mxu0 0.0
        %591 = vmatpush1.msra.mxu0 0.0
        %592 = vmatprep.subr.mxu0 0.0
        %593 = vmatpush1.msra.mxu0 0.0
        %594 = vmatprep.subr.mxu0 0.0
        %595 = vmatpush1.msra.mxu0 0.0
        %596 = vmatprep.subr.mxu0 0.0
        %597 = vmatpush1.msra.mxu0 0.0
        %598 = vmatprep.mubr.f32.mxu0 0.0
        %599 = vmatmul.mubr.f32.gmra.mrb[0].mxu0 %v523
        %v600 = vpop.f32.mrb[0].mxu0
        %v601 = vadd.f32 %v500, %v600
        %v602 = vpop.f32.mrb[0].mxu0
        %v603 = vadd.f32 %v502, %v602
        %604 = vmatprep.mubr.f32.mxu0 0.0
        %605 = vmatmul.mubr.f32.gmra.mrb[0].mxu0 %v526
        %v606 = vpop.f32.mrb[0].mxu0
        %v607 = vadd.f32 %v506, %v606
        %v608 = vpop.f32.mrb[0].mxu0
        %v609 = vadd.f32 %v508, %v608
        %610 = vmatprep.mubr.f32.mxu0 0.0
        %611 = vmatmul.mubr.f32.gmra.mrb[0].mxu0 %v529
        %v612 = vpop.f32.mrb[0].mxu0
        %v613 = vadd.f32 %v512, %v612
        %v614 = vpop.f32.mrb[0].mxu0
        %v615 = vadd.f32 %v514, %v614
        %616 = vmatprep.mubr.f32.mxu0 0.0
        %617 = vmatmul.mubr.f32.gmra.mrb[0].mxu0 %v532
        %v618 = vpop.f32.mrb[0].mxu0
        %v619 = vadd.f32 %v518, %v618
        %v620 = vpop.f32.mrb[0].mxu0
        %v621 = vadd.f32 %v520, %v620
        %622 = vdwg.mxu0
        %s623 = scalar_lea.vmem [#allocation2], 256
        %v624 = vld [vmem:[%s623] sm:$0xff]
        %v625 = vld [vmem:[%s623 + $0x8] sm:$0xff]
        %v626 = vld [vmem:[%s623 + $0x10] sm:$0xff]
        %v627 = vld [vmem:[%s623 + $0x18] sm:$0xff]
        %v628 = vld [vmem:[%s623 + $0x20] sm:$0xff]
        %v629 = vld [vmem:[%s623 + $0x28] sm:$0xff]
        %v630 = vld [vmem:[%s623 + $0x30] sm:$0xff]
        %v631 = vld [vmem:[%s623 + $0x38] sm:$0xff]
        %v632 = vld [vmem:[%s623 + $0x40] sm:$0xff]
        %v633 = vld [vmem:[%s623 + $0x48] sm:$0xff]
        %v634 = vld [vmem:[%s623 + $0x50] sm:$0xff]
        %v635 = vld [vmem:[%s623 + $0x58] sm:$0xff]
        %v636 = vld [vmem:[%s623 + $0x60] sm:$0xff]
        %v637 = vld [vmem:[%s623 + $0x68] sm:$0xff]
        %v638 = vld [vmem:[%s623 + $0x70] sm:$0xff]
        %v639 = vld [vmem:[%s623 + $0x78] sm:$0xff]
        %v641 = vsel %vm420, %v369, 0
        %v644 = vsel %vm420, %v374, 0
        %v647 = vsel %vm420, %v379, 0
        %v650 = vsel %vm420, %v384, 0
        %652 = vmatprep.subr.mxu0 %v625
        %653 = vmatpush1.msra.mxu0 %v624
        %654 = vmatprep.subr.mxu0 %v627
        %655 = vmatpush1.msra.mxu0 %v626
        %656 = vmatprep.subr.mxu0 %v629
        %657 = vmatpush1.msra.mxu0 %v628
        %658 = vmatprep.subr.mxu0 %v631
        %659 = vmatpush1.msra.mxu0 %v630
        %660 = vmatprep.subr.mxu0 %v633
        %661 = vmatpush1.msra.mxu0 %v632
        %662 = vmatprep.subr.mxu0 %v635
        %663 = vmatpush1.msra.mxu0 %v634
        %664 = vmatprep.subr.mxu0 %v637
        %665 = vmatpush1.msra.mxu0 %v636
        %666 = vmatprep.subr.mxu0 %v639
        %667 = vmatpush1.msra.mxu0 %v638
        %668 = vmatprep.subr.mxu0 0.0
        %669 = vmatpush1.msra.mxu0 0.0
        %670 = vmatprep.subr.mxu0 0.0
        %671 = vmatpush1.msra.mxu0 0.0
        %672 = vmatprep.subr.mxu0 0.0
        %673 = vmatpush1.msra.mxu0 0.0
        %674 = vmatprep.subr.mxu0 0.0
        %675 = vmatpush1.msra.mxu0 0.0
        %676 = vmatprep.subr.mxu0 0.0
        %677 = vmatpush1.msra.mxu0 0.0
        %678 = vmatprep.subr.mxu0 0.0
        %679 = vmatpush1.msra.mxu0 0.0
        %680 = vmatprep.subr.mxu0 0.0
        %681 = vmatpush1.msra.mxu0 0.0
        %682 = vmatprep.subr.mxu0 0.0
        %683 = vmatpush1.msra.mxu0 0.0
        %684 = vmatprep.subr.mxu0 0.0
        %685 = vmatpush1.msra.mxu0 0.0
        %686 = vmatprep.subr.mxu0 0.0
        %687 = vmatpush1.msra.mxu0 0.0
        %688 = vmatprep.subr.mxu0 0.0
        %689 = vmatpush1.msra.mxu0 0.0
        %690 = vmatprep.subr.mxu0 0.0
        %691 = vmatpush1.msra.mxu0 0.0
        %692 = vmatprep.subr.mxu0 0.0
        %693 = vmatpush1.msra.mxu0 0.0
        %694 = vmatprep.subr.mxu0 0.0
        %695 = vmatpush1.msra.mxu0 0.0
        %696 = vmatprep.subr.mxu0 0.0
        %697 = vmatpush1.msra.mxu0 0.0
        %698 = vmatprep.subr.mxu0 0.0
        %699 = vmatpush1.msra.mxu0 0.0
        %700 = vmatprep.subr.mxu0 0.0
        %701 = vmatpush1.msra.mxu0 0.0
        %702 = vmatprep.subr.mxu0 0.0
        %703 = vmatpush1.msra.mxu0 0.0
        %704 = vmatprep.subr.mxu0 0.0
        %705 = vmatpush1.msra.mxu0 0.0
        %706 = vmatprep.subr.mxu0 0.0
        %707 = vmatpush1.msra.mxu0 0.0
        %708 = vmatprep.subr.mxu0 0.0
        %709 = vmatpush1.msra.mxu0 0.0
        %710 = vmatprep.subr.mxu0 0.0
        %711 = vmatpush1.msra.mxu0 0.0
        %712 = vmatprep.subr.mxu0 0.0
        %713 = vmatpush1.msra.mxu0 0.0
        %714 = vmatprep.subr.mxu0 0.0
        %715 = vmatpush1.msra.mxu0 0.0
        %716 = vmatprep.mubr.f32.mxu0 0.0
        %717 = vmatmul.mubr.f32.gmra.mrb[0].mxu0 %v641
        %v718 = vpop.f32.mrb[0].mxu0
        %v719 = vadd.f32 0.0, %v718
        %v720 = vpop.f32.mrb[0].mxu0
        %v721 = vadd.f32 0.0, %v720
        %722 = vmatprep.mubr.f32.mxu0 0.0
        %723 = vmatmul.mubr.f32.gmra.mrb[0].mxu0 %v644
        %v724 = vpop.f32.mrb[0].mxu0
        %v725 = vadd.f32 0.0, %v724
        %v726 = vpop.f32.mrb[0].mxu0
        %v727 = vadd.f32 0.0, %v726
        %728 = vmatprep.mubr.f32.mxu0 0.0
        %729 = vmatmul.mubr.f32.gmra.mrb[0].mxu0 %v647
        %v730 = vpop.f32.mrb[0].mxu0
        %v731 = vadd.f32 0.0, %v730
        %v732 = vpop.f32.mrb[0].mxu0
        %v733 = vadd.f32 0.0, %v732
        %734 = vmatprep.mubr.f32.mxu0 0.0
        %735 = vmatmul.mubr.f32.gmra.mrb[0].mxu0 %v650
        %v736 = vpop.f32.mrb[0].mxu0
        %v737 = vadd.f32 0.0, %v736
        %v738 = vpop.f32.mrb[0].mxu0
        %v739 = vadd.f32 0.0, %v738
        %740 = vdwg.mxu0
        %v741 = vadd.f32 %v601, %v719
        %v742 = vadd.f32 %v603, %v721
        %v743 = vadd.f32 %v607, %v725
        %v744 = vadd.f32 %v609, %v727
        %v745 = vadd.f32 %v613, %v731
        %v746 = vadd.f32 %v615, %v733
        %v747 = vadd.f32 %v619, %v737
        %v748 = vadd.f32 %v621, %v739
        %v749 = vld [vmem:[%s3] sm:$0x3]
        %v751 = vlaneseq
        %v752 = vshrl.u32 %v751, 7
        %v753 = vsub.s32 0, %v752
        %v754 = vrot.slane %v749, %v753
        %v755 = vlaneseq
        %v756 = vshrl.u32 %v755, 7
        %v757 = vsub.s32 1, %v756
        %v758 = vrot.slane %v749, %v757
        %v761 = vadd.f32 %v741, %v754
        %v762 = vadd.f32 %v742, %v758
        %v763 = vadd.f32 %v743, %v754
        %v764 = vadd.f32 %v744, %v758
        %v765 = vadd.f32 %v745, %v754
        %v766 = vadd.f32 %v746, %v758
        %v767 = vadd.f32 %v747, %v754
        %v768 = vadd.f32 %v748, %v758
        %769 = vst [vmem:[%s205] sm:$0xff] %v761
        %770 = vst [vmem:[%s205 + $0x8] sm:$0xff] %v762
        %771 = vst [vmem:[%s205 + $0x10] sm:$0xff] %v763
        %772 = vst [vmem:[%s205 + $0x18] sm:$0xff] %v764
        %773 = vst [vmem:[%s205 + $0x20] sm:$0xff] %v765
        %774 = vst [vmem:[%s205 + $0x28] sm:$0xff] %v766
        %775 = vst [vmem:[%s205 + $0x30] sm:$0xff] %v767
        %776 = vst [vmem:[%s205 + $0x38] sm:$0xff] %v768
        %s777 = sand.u32 %s116, 1
        %s778 = scalar_lea.sflag [#allocation4], %s777
        %s779 = sand.u32 %s116, 1
        %s780 = smul.addr %s779, 64
        %s781 = scalar_lea.vmem [#allocation5], %s780
        // Predicated region
        $region41: #{tpu_custom_call.1} parent=35 // pred_check
          %p782 = pneg %p126
        $region42: #{tpu_custom_call.1} parent=35 // pred_check_branch
          %784 = sbr.rel (%p782) target = $region44
        $region43: #{tpu_custom_call.1} parent=35 // pred_region
          %s786 = ssub.s32 1024, 1024
          %787 = vsyncadd %s778, %s786
          %s788 = smul.addr %s19, 8
          %s789 = smul.addr %s788, 128
          %s790 = scalar_lea.hbm %s4, %s789
          %s791 = sshll.u32 %s781, 4
          %s792 = int_to_ptr.vmem [resolvable:$true] %s791
          %797 = dma.vmem_to_hbm [thread:$0]  %s792, 1024, %s790, %s778, 256, 256, 16
        $region44: #{tpu_custom_call.1} parent=35 // pred_fallthru
          _
      $region36: #{tpu_custom_call.1} parent=5 // pred_fallthru
        _
      %p798 = scmp.le.s32.totalorder 2, %s14
      // Predicated region
      $region45: #{tpu_custom_call.1} parent=5 // pred_check
        %p799 = pneg %p798
      $region46: #{tpu_custom_call.1} parent=5 // pred_check_branch
        %801 = sbr.rel (%p799) target = $region48
      $region47: #{tpu_custom_call.1} parent=5 // pred_region
        %s802 = ssub.s32 %s14, 2
        // Predicated region
        $region49: #{tpu_custom_call.1} parent=47 // pred_check
          %p803 = pneg %p132
        $region50: #{tpu_custom_call.1} parent=47 // pred_check_branch
          %805 = sbr.rel (%p803) target = $region52
        $region51: #{tpu_custom_call.1} parent=47 // pred_region
          %s806 = sand.u32 %s117, 1
          %s807 = scalar_lea.sflag [#allocation4], %s806
          %s808 = sand.u32 %s117, 1
          %s809 = smul.addr %s808, 64
          %s810 = scalar_lea.vmem [#allocation5], %s809
          %811 = dma.done %s807, 1024
        $region52: #{tpu_custom_call.1} parent=47 // pred_fallthru
          _
      $region48: #{tpu_custom_call.1} parent=5 // pred_fallthru
        _
    $region6: #{tpu_custom_call.1} parent=1 // loop_footer
      %s18 = sadd.s32 1, %s14
    $region7: #{tpu_custom_call.1} parent=1 // loop_footer_branch
      %13 = sbr.rel target = $region3
    $region8: #{tpu_custom_call.1} parent=1 // loop_exit
      _
    %812 = vsyncpa [#allocation3], 1
    %s813 = scalar_lea.sflag [#allocation3], 1
    %814 = vsyncpa %s813, 1
    %815 = vsyncpa [#allocation4], 1
    %s816 = scalar_lea.sflag [#allocation4], 1
    %817 = vsyncpa %s816, 1

</llo_original>
